<compile_context>
chip_gen: v6e
topology: v6e:2x2x1
jax: 0.10.0
libtpu: 0.0.40
codegen_flags: <defaults>
</compile_context>

<pallas_src>
import functools

import jax
import jax.numpy as jnp
from jax.experimental import pallas as pl
from jax.experimental.pallas import tpu as pltpu


def _token_exchange_kernel(mask1_ref, mask2_ref, im1_ref, im2_ref,
                           x1_ref, x2_ref, *, thr):
    # mask refs: (TR, 1) in the mask's native dtype; image refs: (TR, C).
    m1 = mask1_ref[...]
    m2 = mask2_ref[...]
    a = im1_ref[...]
    b = im2_ref[...]
    # Per-token select, broadcast over the channel (lane) dim.  Pure VPU work;
    # the kernel is HBM-bandwidth bound so nothing else to optimize here.
    x1_ref[...] = jnp.where(m1 >= thr, a, b)
    x2_ref[...] = jnp.where(m2 >= thr, b, a)


def _choose_row_tile(num_rows, channels, img_dtype, mask_dtype,
                     vmem_budget_bytes=20 * 1024 * 1024, max_rows=4096):
    """Pick a row-tile size that keeps all pipelined buffers inside VMEM.

    Budget math (per tile row, x2 for double buffering):
      4 image-sized blocks (im1, im2, x1, x2) of `channels` elements, plus
      2 mask blocks whose (TR, 1) shape is padded to 128 lanes in VMEM.
    """
    img_bytes = jnp.dtype(img_dtype).itemsize
    msk_bytes = jnp.dtype(mask_dtype).itemsize
    bytes_per_row = 2 * (4 * channels * img_bytes + 2 * 128 * msk_bytes)
    tr = max(32, vmem_budget_bytes // bytes_per_row)
    tr = (tr // 32) * 32          # keep sublane alignment for f32/bf16/int8
    tr = min(tr, max_rows)
    if tr >= num_rows:
        return num_rows           # single full block; no tiling constraint
    return tr


def token_exchange(im1, im2, mask1, mask2, mask_threshold, *, row_tile=None):
    """im1, im2: [B, N, C]; mask1, mask2: [B, N]; mask_threshold: Python float."""
    B, N, C = im1.shape
    R = B * N

    im1_2d = im1.reshape(R, C)
    im2_2d = im2.reshape(R, C)
    m1 = mask1.reshape(R, 1)      # native dtype, no cast
    m2 = mask2.reshape(R, 1)

    tr = row_tile if row_tile is not None else _choose_row_tile(
        R, C, im1.dtype, mask1.dtype)
    tr = min(tr, R)
    grid = (pl.cdiv(R, tr),)

    img_spec = pl.BlockSpec((tr, C), lambda i: (i, 0))
    msk_spec = pl.BlockSpec((tr, 1), lambda i: (i, 0))

    # Threshold is a Python float in the PyTorch forward -> bake it in.
    kernel = functools.partial(_token_exchange_kernel, thr=float(mask_threshold))

    x1, x2 = pl.pallas_call(
        kernel,
        out_shape=(jax.ShapeDtypeStruct((R, C), im1.dtype),
                   jax.ShapeDtypeStruct((R, C), im2.dtype)),
        grid=grid,
        in_specs=[msk_spec, msk_spec, img_spec, img_spec],
        out_specs=(img_spec, img_spec),
        compiler_params=pltpu.CompilerParams(
            dimension_semantics=("parallel",),
            vmem_limit_bytes=32 * 1024 * 1024),
    )(m1, m2, im1_2d, im2_2d)

    return x1.reshape(B, N, C), x2.reshape(B, N, C)


def _reference(im1, im2, mask1, mask2, thr):
    # Pure-JAX reference (same semantics as the PyTorch boolean indexing).
    ref_x1 = jnp.where((mask1 >= thr)[:, :, None], im1, im2)
    ref_x2 = jnp.where((mask2 >= thr)[:, :, None], im2, im1)
    return ref_x1, ref_x2


if __name__ == "__main__":
    key = jax.random.PRNGKey(0)
    k1, k2, k3, k4 = jax.random.split(key, 4)

    thr = 0.5

    # Case 1: Swin-like shapes with lane-dense C (multiple of 128).  Force a
    # multi-step row-tiled grid (32 rows/block -> 4 grid steps) so the real
    # tiled pipeline path is exercised, not just the single-block case.
    B, N, C = 2, 64, 128
    im1 = jax.random.normal(k1, (B, N, C), dtype=jnp.float32)
    im2 = jax.random.normal(k2, (B, N, C), dtype=jnp.float32)
    mask1 = jax.random.uniform(k3, (B, N), dtype=jnp.float32)
    mask2 = jax.random.uniform(k4, (B, N), dtype=jnp.float32)

    x1, x2 = token_exchange(im1, im2, mask1, mask2, thr, row_tile=32)
    x1, x2 = jax.block_until_ready((x1, x2))
    ref_x1, ref_x2 = _reference(im1, im2, mask1, mask2, thr)
    assert jnp.allclose(x1, ref_x1)
    assert jnp.allclose(x2, ref_x2)

    # Case 2: odd shapes (C not a multiple of 128, odd token count) through the
    # auto-selected single-block path — block shape equals full array dims, so
    # the (8,128) tiling constraint does not apply.
    B2, N2, C2 = 2, 25, 96
    k5, k6, k7, k8 = jax.random.split(k4, 4)
    jm1 = jax.random.normal(k5, (B2, N2, C2), dtype=jnp.float32)
    jm2 = jax.random.normal(k6, (B2, N2, C2), dtype=jnp.float32)
    jmask1 = jax.random.uniform(k7, (B2, N2), dtype=jnp.float32)
    jmask2 = jax.random.uniform(k8, (B2, N2), dtype=jnp.float32)

    y1, y2 = token_exchange(jm1, jm2, jmask1, jmask2, thr)
    y1, y2 = jax.block_until_ready((y1, y2))
    ref_y1, ref_y2 = _reference(jm1, jm2, jmask1, jmask2, thr)
    assert jnp.allclose(y1, ref_y1)
    assert jnp.allclose(y2, ref_y2)

    print("KERNEL_OK")
</pallas_src>

<mosaic_0001>
module attributes {stable_mosaic.version = 11 : i64} {
  func.func @_token_exchange_kernel(%arg0: i32, %arg1: memref<32x1xf32, #tpu.memory_space<vmem>>, %arg2: memref<32x1xf32, #tpu.memory_space<vmem>>, %arg3: memref<32x128xf32, #tpu.memory_space<vmem>>, %arg4: memref<32x128xf32, #tpu.memory_space<vmem>>, %arg5: memref<32x128xf32, #tpu.memory_space<vmem>>, %arg6: memref<32x128xf32, #tpu.memory_space<vmem>>) attributes {dimension_semantics = [#tpu.dimension_semantics<parallel>], iteration_bounds = array<i64: 4>, scalar_prefetch = 0 : i64, scratch_operands = 0 : i64, tpu.core_type = #tpu.core_type<tc>, window_params = [{transform_indices = @transform_0, window_bounds = array<i64: 32, 1>}, {transform_indices = @transform_1, window_bounds = array<i64: 32, 1>}, {transform_indices = @transform_2, window_bounds = array<i64: 32, 128>}, {transform_indices = @transform_3, window_bounds = array<i64: 32, 128>}, {transform_indices = @transform_4, window_bounds = array<i64: 32, 128>}, {transform_indices = @transform_5, window_bounds = array<i64: 32, 128>}]} {
    %c0 = arith.constant 0 : index
    %c0_0 = arith.constant 0 : index
    %0 = vector.load %arg1[%c0, %c0_0] : memref<32x1xf32, #tpu.memory_space<vmem>>, vector<32x1xf32>
    %c0_1 = arith.constant 0 : index
    %c0_2 = arith.constant 0 : index
    %1 = vector.load %arg2[%c0_1, %c0_2] : memref<32x1xf32, #tpu.memory_space<vmem>>, vector<32x1xf32>
    %c0_3 = arith.constant 0 : index
    %c0_4 = arith.constant 0 : index
    %2 = vector.load %arg3[%c0_3, %c0_4] : memref<32x128xf32, #tpu.memory_space<vmem>>, vector<32x128xf32>
    %c0_5 = arith.constant 0 : index
    %c0_6 = arith.constant 0 : index
    %3 = vector.load %arg4[%c0_5, %c0_6] : memref<32x128xf32, #tpu.memory_space<vmem>>, vector<32x128xf32>
    %cst = arith.constant 5.000000e-01 : f32
    %4 = vector.broadcast %cst : f32 to vector<32x1xf32>
    %5 = arith.cmpf oge, %0, %4 : vector<32x1xf32>
    %6 = vector.shape_cast %5 : vector<32x1xi1> to vector<32x1xi1>
    %7 = vector.broadcast %6 : vector<32x1xi1> to vector<32x128xi1>
    %8 = arith.select %7, %2, %3 : vector<32x128xi1>, vector<32x128xf32>
    %c0_7 = arith.constant 0 : index
    %c0_8 = arith.constant 0 : index
    %9 = vector.load %arg5[%c0_7, %c0_8] : memref<32x128xf32, #tpu.memory_space<vmem>>, vector<32x128xf32>
    tpu.vector_store %arg5[%c0_7, %c0_8], %8 {strides = array<i32>} : memref<32x128xf32, #tpu.memory_space<vmem>>, vector<32x128xf32>,
    %cst_9 = arith.constant 5.000000e-01 : f32
    %10 = vector.broadcast %cst_9 : f32 to vector<32x1xf32>
    %11 = arith.cmpf oge, %1, %10 : vector<32x1xf32>
    %12 = vector.shape_cast %11 : vector<32x1xi1> to vector<32x1xi1>
    %13 = vector.broadcast %12 : vector<32x1xi1> to vector<32x128xi1>
    %14 = arith.select %13, %3, %2 : vector<32x128xi1>, vector<32x128xf32>
    %c0_10 = arith.constant 0 : index
    %c0_11 = arith.constant 0 : index
    %15 = vector.load %arg6[%c0_10, %c0_11] : memref<32x128xf32, #tpu.memory_space<vmem>>, vector<32x128xf32>
    tpu.vector_store %arg6[%c0_10, %c0_11], %14 {strides = array<i32>} : memref<32x128xf32, #tpu.memory_space<vmem>>, vector<32x128xf32>,
    return
  }
  func.func @transform_0(%arg0: i32) -> (i32, i32) {
    %c0_i32 = arith.constant 0 : i32
    %c0_i32_0 = arith.constant 0 : i32
    return %arg0, %c0_i32 : i32, i32
  }
  func.func @transform_1(%arg0: i32) -> (i32, i32) {
    %c0_i32 = arith.constant 0 : i32
    %c0_i32_0 = arith.constant 0 : i32
    return %arg0, %c0_i32 : i32, i32
  }
  func.func @transform_2(%arg0: i32) -> (i32, i32) {
    %c0_i32 = arith.constant 0 : i32
    %c0_i32_0 = arith.constant 0 : i32
    return %arg0, %c0_i32 : i32, i32
  }
  func.func @transform_3(%arg0: i32) -> (i32, i32) {
    %c0_i32 = arith.constant 0 : i32
    %c0_i32_0 = arith.constant 0 : i32
    return %arg0, %c0_i32 : i32, i32
  }
  func.func @transform_4(%arg0: i32) -> (i32, i32) {
    %c0_i32 = arith.constant 0 : i32
    %c0_i32_0 = arith.constant 0 : i32
    return %arg0, %c0_i32 : i32, i32
  }
  func.func @transform_5(%arg0: i32) -> (i32, i32) {
    %c0_i32 = arith.constant 0 : i32
    %c0_i32_0 = arith.constant 0 : i32
    return %arg0, %c0_i32 : i32, i32
  }
}

</mosaic_0001>

<llo_original>
// kernel: tpu_custom_call.1
$region0: #{tpu_custom_call.1}
  #allocation0 [shape = 'u32[]', space=smem, size = 0x4, offset = 0x4, fixed_abs, tag = 'smem constant byte address 0x4 - core index']
  #allocation1 [shape = 'u32[144,128]{1,0:T(1,128)}', space=vmem, size = 0x12000, scoped, tag = 'internal scratch']
  %s0 = inlined_call_operand.vmem [shape: f32[128,1], index: 0, kind: input, shape index: {}]
  %s1 = inlined_call_operand.vmem [shape: f32[128,1], index: 1, kind: input, shape index: {}]
  %s2 = inlined_call_operand.vmem [shape: f32[128,128], index: 2, kind: input, shape index: {}]
  %s3 = inlined_call_operand.vmem [shape: f32[128,128], index: 3, kind: input, shape index: {}]
  %s4 = inlined_call_operand.hbm [shape: f32[128,128], index: 4, kind: output, shape index: {0}]
  %s5 = inlined_call_operand.hbm [shape: f32[128,128], index: 5, kind: output, shape index: {1}]
  %6 = xla_tuple %s4, %s5
  %s7 = sld [smem:[#allocation0]]
  $region57: #{tpu_custom_call.1} parent=0
    _
  %s9 = ssub.s32 1, %s7
  %s10 = scalar_select 0, %s9, %s7
  $region1: #{tpu_custom_call.1} parent=0
    #allocation2 [shape = 'u8[32768]{0}', space=vmem, size = 0x8000, scoped, tag = 'output window, operand 0']
    #allocation3 [shape = 's32[2]{0}', space=sflag, size = 0x8, scoped, tag = 'scoped memory for tpu_custom_call.1']
    #allocation4 [shape = 'u8[32768]{0}', space=vmem, size = 0x8000, scoped, tag = 'output window, operand 1']
    #allocation5 [shape = 's32[2]{0}', space=sflag, size = 0x8, scoped, tag = 'scoped memory for tpu_custom_call.1']
    %11 = vsyncpa [#allocation3], 0
    %s12 = scalar_lea.sflag [#allocation3], 1
    %13 = vsyncpa %s12, 0
    %14 = vsyncpa [#allocation5], 0
    %s15 = scalar_lea.sflag [#allocation5], 1
    %16 = vsyncpa %s15, 0
    loop: start=0, step=1, limit=6
    $region2: #{tpu_custom_call.1} parent=1 // loop_pre_header
      _
    $region3: #{tpu_custom_call.1} parent=1 // loop_header
      %s18 = sphi 0, %s22
      %p19 = scmp.ge.s32.totalorder %s18, 6
      %s28 = sphi 0, %s30
      %s31 = sphi 0, %s28
      %s32 = sphi 0, %s31
      %s48 = sphi 0, %s32
      %s54 = sphi 0, %s56
      %s57 = sphi 0, %s54
      %s58 = sphi 0, %s57
      %s74 = sphi 0, %s58
      %s80 = sphi 0, %s82
      %s83 = sphi 0, %s80
      %s84 = sphi 0, %s83
      %s100 = sphi 0, %s84
      %s106 = sphi 0, %s108
      %s109 = sphi 0, %s106
      %s110 = sphi 0, %s109
      %s126 = sphi 0, %s110
      %s132 = sphi 0, %s134
      %s135 = sphi 0, %s132
      %s136 = sphi 0, %s135
      %s152 = sphi 0, %s136
      %s158 = sphi 0, %s160
      %s161 = sphi 0, %s158
      %s162 = sphi 0, %s161
      %s178 = sphi 0, %s162
    $region4: #{tpu_custom_call.1} parent=1 // loop_header_branch
      %21 = sbr.rel (%p19) target = $region8
    $region5: #{tpu_custom_call.1} parent=1 // loop_body
      %s23 = ssub.s32 %s18, 1
      %s24 = ssub.s32 %s18, 2
      %s25 = sadd.s32 %s18, 1
      %s26 = ssub.s32 %s18, %s25
      %p27 = scmp.eq.s32.totalorder %s26, 0
      %s29 = sadd.s32 %s28, 1
      %s30 = scalar_select %p27, %s28, %s29
      %p33 = pneg %p27
      %p34 = scmp.eq.s32.totalorder %s18, 3
      %p35 = por %p33, %p34
      %p36 = scmp.ne.s32.totalorder %s28, %s31
      %p37 = scmp.eq.s32.totalorder %s18, 0
      %p38 = por %p36, %p37
      %p39 = scmp.ne.s32.totalorder %s28, %s31
      %p40 = scmp.eq.s32.totalorder %s23, 3
      %p41 = por %p39, %p40
      %p42 = scmp.ne.s32.totalorder %s31, %s32
      %p43 = scmp.eq.s32.totalorder %s23, 0
      %p44 = por %p42, %p43
      %p45 = scmp.ne.s32.totalorder %s31, %s32
      %p46 = scmp.eq.s32.totalorder %s24, 3
      %p47 = por %p45, %p46
      %p49 = scmp.ne.s32.totalorder %s32, %s48
      %p50 = scmp.eq.s32.totalorder %s24, 0
      %p51 = por %p49, %p50
      %s52 = ssub.s32 %s18, %s25
      %p53 = scmp.eq.s32.totalorder %s52, 0
      %s55 = sadd.s32 %s54, 1
      %s56 = scalar_select %p53, %s54, %s55
      %p59 = pneg %p53
      %p60 = scmp.eq.s32.totalorder %s18, 3
      %p61 = por %p59, %p60
      %p62 = scmp.ne.s32.totalorder %s54, %s57
      %p63 = scmp.eq.s32.totalorder %s18, 0
      %p64 = por %p62, %p63
      %p65 = scmp.ne.s32.totalorder %s54, %s57
      %p66 = scmp.eq.s32.totalorder %s23, 3
      %p67 = por %p65, %p66
      %p68 = scmp.ne.s32.totalorder %s57, %s58
      %p69 = scmp.eq.s32.totalorder %s23, 0
      %p70 = por %p68, %p69
      %p71 = scmp.ne.s32.totalorder %s57, %s58
      %p72 = scmp.eq.s32.totalorder %s24, 3
      %p73 = por %p71, %p72
      %p75 = scmp.ne.s32.totalorder %s58, %s74
      %p76 = scmp.eq.s32.totalorder %s24, 0
      %p77 = por %p75, %p76
      %s78 = ssub.s32 %s18, %s25
      %p79 = scmp.eq.s32.totalorder %s78, 0
      %s81 = sadd.s32 %s80, 1
      %s82 = scalar_select %p79, %s80, %s81
      %p85 = pneg %p79
      %p86 = scmp.eq.s32.totalorder %s18, 3
      %p87 = por %p85, %p86
      %p88 = scmp.ne.s32.totalorder %s80, %s83
      %p89 = scmp.eq.s32.totalorder %s18, 0
      %p90 = por %p88, %p89
      %p91 = scmp.ne.s32.totalorder %s80, %s83
      %p92 = scmp.eq.s32.totalorder %s23, 3
      %p93 = por %p91, %p92
      %p94 = scmp.ne.s32.totalorder %s83, %s84
      %p95 = scmp.eq.s32.totalorder %s23, 0
      %p96 = por %p94, %p95
      %p97 = scmp.ne.s32.totalorder %s83, %s84
      %p98 = scmp.eq.s32.totalorder %s24, 3
      %p99 = por %p97, %p98
      %p101 = scmp.ne.s32.totalorder %s84, %s100
      %p102 = scmp.eq.s32.totalorder %s24, 0
      %p103 = por %p101, %p102
      %s104 = ssub.s32 %s18, %s25
      %p105 = scmp.eq.s32.totalorder %s104, 0
      %s107 = sadd.s32 %s106, 1
      %s108 = scalar_select %p105, %s106, %s107
      %p111 = pneg %p105
      %p112 = scmp.eq.s32.totalorder %s18, 3
      %p113 = por %p111, %p112
      %p114 = scmp.ne.s32.totalorder %s106, %s109
      %p115 = scmp.eq.s32.totalorder %s18, 0
      %p116 = por %p114, %p115
      %p117 = scmp.ne.s32.totalorder %s106, %s109
      %p118 = scmp.eq.s32.totalorder %s23, 3
      %p119 = por %p117, %p118
      %p120 = scmp.ne.s32.totalorder %s109, %s110
      %p121 = scmp.eq.s32.totalorder %s23, 0
      %p122 = por %p120, %p121
      %p123 = scmp.ne.s32.totalorder %s109, %s110
      %p124 = scmp.eq.s32.totalorder %s24, 3
      %p125 = por %p123, %p124
      %p127 = scmp.ne.s32.totalorder %s110, %s126
      %p128 = scmp.eq.s32.totalorder %s24, 0
      %p129 = por %p127, %p128
      %s130 = ssub.s32 %s18, %s25
      %p131 = scmp.eq.s32.totalorder %s130, 0
      %s133 = sadd.s32 %s132, 1
      %s134 = scalar_select %p131, %s132, %s133
      %p137 = pneg %p131
      %p138 = scmp.eq.s32.totalorder %s18, 3
      %p139 = por %p137, %p138
      %p140 = scmp.ne.s32.totalorder %s132, %s135
      %p141 = scmp.eq.s32.totalorder %s18, 0
      %p142 = por %p140, %p141
      %p143 = scmp.ne.s32.totalorder %s132, %s135
      %p144 = scmp.eq.s32.totalorder %s23, 3
      %p145 = por %p143, %p144
      %p146 = scmp.ne.s32.totalorder %s135, %s136
      %p147 = scmp.eq.s32.totalorder %s23, 0
      %p148 = por %p146, %p147
      %p149 = scmp.ne.s32.totalorder %s135, %s136
      %p150 = scmp.eq.s32.totalorder %s24, 3
      %p151 = por %p149, %p150
      %p153 = scmp.ne.s32.totalorder %s136, %s152
      %p154 = scmp.eq.s32.totalorder %s24, 0
      %p155 = por %p153, %p154
      %s156 = ssub.s32 %s18, %s25
      %p157 = scmp.eq.s32.totalorder %s156, 0
      %s159 = sadd.s32 %s158, 1
      %s160 = scalar_select %p157, %s158, %s159
      %p163 = pneg %p157
      %p164 = scmp.eq.s32.totalorder %s18, 3
      %p165 = por %p163, %p164
      %p166 = scmp.ne.s32.totalorder %s158, %s161
      %p167 = scmp.eq.s32.totalorder %s18, 0
      %p168 = por %p166, %p167
      %p169 = scmp.ne.s32.totalorder %s158, %s161
      %p170 = scmp.eq.s32.totalorder %s23, 3
      %p171 = por %p169, %p170
      %p172 = scmp.ne.s32.totalorder %s161, %s162
      %p173 = scmp.eq.s32.totalorder %s23, 0
      %p174 = por %p172, %p173
      %p175 = scmp.ne.s32.totalorder %s161, %s162
      %p176 = scmp.eq.s32.totalorder %s24, 3
      %p177 = por %p175, %p176
      %p179 = scmp.ne.s32.totalorder %s162, %s178
      %p180 = scmp.eq.s32.totalorder %s24, 0
      %p181 = por %p179, %p180
      %p182 = scmp.le.s32.totalorder 1, %s18
      %p183 = scmp.lt.s32.totalorder %s18, 5
      %p184 = pnand %p182, %p183
      %p185 = pneg %p184
      // Predicated region
      $region9: #{tpu_custom_call.1} parent=5 // pred_check
        _
      $region10: #{tpu_custom_call.1} parent=5 // pred_check_branch
        %187 = sbr.rel (%p184) target = $region12
      $region11: #{tpu_custom_call.1} parent=5 // pred_region
        %s188 = ssub.s32 %s18, 1
      $region12: #{tpu_custom_call.1} parent=5 // pred_fallthru
        _
      %p189 = scmp.lt.s32.totalorder %s18, 4
      // Predicated region
      $region13: #{tpu_custom_call.1} parent=5 // pred_check
        %p190 = pneg %p189
      $region14: #{tpu_custom_call.1} parent=5 // pred_check_branch
        %192 = sbr.rel (%p190) target = $region16
      $region15: #{tpu_custom_call.1} parent=5 // pred_region
        // Predicated region
        $region17: #{tpu_custom_call.1} parent=15 // pred_check
          %p193 = pneg %p38
        $region18: #{tpu_custom_call.1} parent=15 // pred_check_branch
          %195 = sbr.rel (%p193) target = $region20
        $region19: #{tpu_custom_call.1} parent=15 // pred_region
          %s196 = smul.u32 4, %s18
          %p197 = scmp.lt.s32.totalorder %s196, 15
          %s198 = scalar_select %p197, %s196, 15
          %s199 = smul.addr %s198, 8
          %s200 = scalar_lea.vmem %s0, %s199
          %s201 = smul.u32 4, %s18
        $region20: #{tpu_custom_call.1} parent=15 // pred_fallthru
          _
        // Predicated region
        $region21: #{tpu_custom_call.1} parent=15 // pred_check
          %p202 = pneg %p64
        $region22: #{tpu_custom_call.1} parent=15 // pred_check_branch
          %204 = sbr.rel (%p202) target = $region24
        $region23: #{tpu_custom_call.1} parent=15 // pred_region
          %s205 = smul.u32 4, %s18
          %p206 = scmp.lt.s32.totalorder %s205, 15
          %s207 = scalar_select %p206, %s205, 15
          %s208 = smul.addr %s207, 8
          %s209 = scalar_lea.vmem %s1, %s208
          %s210 = smul.u32 4, %s18
        $region24: #{tpu_custom_call.1} parent=15 // pred_fallthru
          _
        // Predicated region
        $region25: #{tpu_custom_call.1} parent=15 // pred_check
          %p211 = pneg %p90
        $region26: #{tpu_custom_call.1} parent=15 // pred_check_branch
          %213 = sbr.rel (%p211) target = $region28
        $region27: #{tpu_custom_call.1} parent=15 // pred_region
          %s214 = smul.u32 4, %s18
          %p215 = scmp.lt.s32.totalorder %s214, 15
          %s216 = scalar_select %p215, %s214, 15
          %s217 = smul.addr %s216, 8
          %s218 = scalar_lea.vmem %s2, %s217
          %s219 = smul.u32 4, %s18
        $region28: #{tpu_custom_call.1} parent=15 // pred_fallthru
          _
        // Predicated region
        $region29: #{tpu_custom_call.1} parent=15 // pred_check
          %p220 = pneg %p116
        $region30: #{tpu_custom_call.1} parent=15 // pred_check_branch
          %222 = sbr.rel (%p220) target = $region32
        $region31: #{tpu_custom_call.1} parent=15 // pred_region
          %s223 = smul.u32 4, %s18
          %p224 = scmp.lt.s32.totalorder %s223, 15
          %s225 = scalar_select %p224, %s223, 15
          %s226 = smul.addr %s225, 8
          %s227 = scalar_lea.vmem %s3, %s226
          %s228 = smul.u32 4, %s18
        $region32: #{tpu_custom_call.1} parent=15 // pred_fallthru
          _
      $region16: #{tpu_custom_call.1} parent=5 // pred_fallthru
        _
      %p229 = scmp.le.s32.totalorder 1, %s18
      %p230 = scmp.lt.s32.totalorder %s18, 5
      %p231 = pnand %p229, %p230
      %p232 = pneg %p231
      // Predicated region
      $region33: #{tpu_custom_call.1} parent=5 // pred_check
        _
      $region34: #{tpu_custom_call.1} parent=5 // pred_check_branch
        %234 = sbr.rel (%p231) target = $region36
      $region35: #{tpu_custom_call.1} parent=5 // pred_region
        %s235 = ssub.s32 %s18, 1
        %s236 = smul.u32 4, %s23
        %p237 = scmp.lt.s32.totalorder %s236, 15
        %s238 = scalar_select %p237, %s236, 15
        %s239 = smul.addr %s238, 8
        %s240 = scalar_lea.vmem %s0, %s239
        %p241 = pneg %p44
        %p242 = pneg %p41
        %s243 = smul.u32 4, %s23
        %p244 = scmp.lt.s32.totalorder %s243, 15
        %s245 = scalar_select %p244, %s243, 15
        %s246 = smul.addr %s245, 8
        %s247 = scalar_lea.vmem %s1, %s246
        %p248 = pneg %p70
        %p249 = pneg %p67
        %s250 = smul.u32 4, %s23
        %p251 = scmp.lt.s32.totalorder %s250, 15
        %s252 = scalar_select %p251, %s250, 15
        %s253 = smul.addr %s252, 8
        %s254 = scalar_lea.vmem %s2, %s253
        %p255 = pneg %p96
        %p256 = pneg %p93
        %s257 = smul.u32 4, %s23
        %p258 = scmp.lt.s32.totalorder %s257, 15
        %s259 = scalar_select %p258, %s257, 15
        %s260 = smul.addr %s259, 8
        %s261 = scalar_lea.vmem %s3, %s260
        %p262 = pneg %p122
        %p263 = pneg %p119
        %p264 = pneg %p148
        %p265 = pneg %p145
        %s266 = sand.u32 %s135, 1
        %s267 = scalar_lea.sflag [#allocation3], %s266
        %s268 = sand.u32 %s135, 1
        %s269 = smul.addr %s268, 32
        %s270 = scalar_lea.vmem [#allocation2], %s269
        %p271 = pneg %p174
        %p272 = pneg %p171
        %s273 = sand.u32 %s161, 1
        %s274 = scalar_lea.sflag [#allocation5], %s273
        %s275 = sand.u32 %s161, 1
        %s276 = smul.addr %s275, 32
        %s277 = scalar_lea.vmem [#allocation4], %s276
        %s278 = smul.u32 4, %s23
        %p279 = scmp.lt.s32.totalorder %s278, 15
        %s280 = scalar_select %p279, %s278, 15
        %s281 = smul.addr %s280, 8
        %s282 = scalar_lea.vmem %s0, %s281
        %s283 = smul.u32 4, %s23
        %s284 = smul.u32 4, %s23
        %p285 = scmp.lt.s32.totalorder %s284, 15
        %s286 = scalar_select %p285, %s284, 15
        %s287 = smul.addr %s286, 8
        %s288 = scalar_lea.vmem %s1, %s287
        %s289 = smul.u32 4, %s23
        %s290 = smul.u32 4, %s23
        %p291 = scmp.lt.s32.totalorder %s290, 15
        %s292 = scalar_select %p291, %s290, 15
        %s293 = smul.addr %s292, 8
        %s294 = scalar_lea.vmem %s2, %s293
        %s295 = smul.u32 4, %s23
        %s296 = smul.u32 4, %s23
        %p297 = scmp.lt.s32.totalorder %s296, 15
        %s298 = scalar_select %p297, %s296, 15
        %s299 = smul.addr %s298, 8
        %s300 = scalar_lea.vmem %s3, %s299
        %s301 = smul.u32 4, %s23
        %s302 = smul.u32 4, %s23
        %s303 = smul.u32 4, %s23
        %v304 = vld [vmem:[%s282] sm:$0xff]
        %v305 = vld [vmem:[%s282 + $0x8] sm:$0xff]
        %v306 = vld [vmem:[%s282 + $0x10] sm:$0xff]
        %v307 = vld [vmem:[%s282 + $0x18] sm:$0xff]
        %v308 = vld [vmem:[%s288] sm:$0xff]
        %v309 = vld [vmem:[%s288 + $0x8] sm:$0xff]
        %v310 = vld [vmem:[%s288 + $0x10] sm:$0xff]
        %v311 = vld [vmem:[%s288 + $0x18] sm:$0xff]
        %v312 = vld [vmem:[%s294] sm:$0xff]
        %v313 = vld [vmem:[%s294 + $0x8] sm:$0xff]
        %v314 = vld [vmem:[%s294 + $0x10] sm:$0xff]
        %v315 = vld [vmem:[%s294 + $0x18] sm:$0xff]
        %v316 = vld [vmem:[%s300] sm:$0xff]
        %v317 = vld [vmem:[%s300 + $0x8] sm:$0xff]
        %v318 = vld [vmem:[%s300 + $0x10] sm:$0xff]
        %v319 = vld [vmem:[%s300 + $0x18] sm:$0xff]
        %vm320 = vcmp.ge.f32.partialorder %v304, 0.5
        %vm321 = vcmp.ge.f32.partialorder %v305, 0.5
        %vm322 = vcmp.ge.f32.partialorder %v306, 0.5
        %vm323 = vcmp.ge.f32.partialorder %v307, 0.5
        %v324 = vsel %vm320, 1, 0
        %v325 = vsel %vm321, 1, 0
        %v326 = vsel %vm322, 1, 0
        %v327 = vsel %vm323, 1, 0
        %328 = vset.pattern.permute.xlu0 0
        %329 = vperm.xlu0 %328, %v324
        %v330 = vpop.permute.xlu0 %329
        %331 = vset.pattern.permute.xlu0 0
        %332 = vperm.xlu0 %331, %v325
        %v333 = vpop.permute.xlu0 %332
        %334 = vset.pattern.permute.xlu0 0
        %335 = vperm.xlu0 %334, %v326
        %v336 = vpop.permute.xlu0 %335
        %337 = vset.pattern.permute.xlu0 0
        %338 = vperm.xlu0 %337, %v327
        %v339 = vpop.permute.xlu0 %338
        %vm340 = vcmp.eq.s32.totalorder %v330, 1
        %vm341 = vcmp.eq.s32.totalorder %v333, 1
        %vm342 = vcmp.eq.s32.totalorder %v336, 1
        %vm343 = vcmp.eq.s32.totalorder %v339, 1
        %v344 = vsel %vm340, %v312, %v316
        %v345 = vsel %vm341, %v313, %v317
        %v346 = vsel %vm342, %v314, %v318
        %v347 = vsel %vm343, %v315, %v319
        %348 = vst [vmem:[%s270] sm:$0xff] %v344
        %349 = vst [vmem:[%s270 + $0x8] sm:$0xff] %v345
        %350 = vst [vmem:[%s270 + $0x10] sm:$0xff] %v346
        %351 = vst [vmem:[%s270 + $0x18] sm:$0xff] %v347
        %vm352 = vcmp.ge.f32.partialorder %v308, 0.5
        %vm353 = vcmp.ge.f32.partialorder %v309, 0.5
        %vm354 = vcmp.ge.f32.partialorder %v310, 0.5
        %vm355 = vcmp.ge.f32.partialorder %v311, 0.5
        %v356 = vsel %vm352, 1, 0
        %v357 = vsel %vm353, 1, 0
        %v358 = vsel %vm354, 1, 0
        %v359 = vsel %vm355, 1, 0
        %360 = vset.pattern.permute.xlu0 0
        %361 = vperm.xlu0 %360, %v356
        %v362 = vpop.permute.xlu0 %361
        %363 = vset.pattern.permute.xlu0 0
        %364 = vperm.xlu0 %363, %v357
        %v365 = vpop.permute.xlu0 %364
        %366 = vset.pattern.permute.xlu0 0
        %367 = vperm.xlu0 %366, %v358
        %v368 = vpop.permute.xlu0 %367
        %369 = vset.pattern.permute.xlu0 0
        %370 = vperm.xlu0 %369, %v359
        %v371 = vpop.permute.xlu0 %370
        %vm372 = vcmp.eq.s32.totalorder %v362, 1
        %vm373 = vcmp.eq.s32.totalorder %v365, 1
        %vm374 = vcmp.eq.s32.totalorder %v368, 1
        %vm375 = vcmp.eq.s32.totalorder %v371, 1
        %v376 = vsel %vm372, %v316, %v312
        %v377 = vsel %vm373, %v317, %v313
        %v378 = vsel %vm374, %v318, %v314
        %v379 = vsel %vm375, %v319, %v315
        %380 = vst [vmem:[%s277] sm:$0xff] %v376
        %381 = vst [vmem:[%s277 + $0x8] sm:$0xff] %v377
        %382 = vst [vmem:[%s277 + $0x10] sm:$0xff] %v378
        %383 = vst [vmem:[%s277 + $0x18] sm:$0xff] %v379
        %s384 = sand.u32 %s135, 1
        %s385 = scalar_lea.sflag [#allocation3], %s384
        %s386 = sand.u32 %s135, 1
        %s387 = smul.addr %s386, 32
        %s388 = scalar_lea.vmem [#allocation2], %s387
        %s389 = sand.u32 %s161, 1
        %s390 = scalar_lea.sflag [#allocation5], %s389
        %s391 = sand.u32 %s161, 1
        %s392 = smul.addr %s391, 32
        %s393 = scalar_lea.vmem [#allocation4], %s392
        // Predicated region
        $region37: #{tpu_custom_call.1} parent=35 // pred_check
          %p394 = pneg %p145
        $region38: #{tpu_custom_call.1} parent=35 // pred_check_branch
          %396 = sbr.rel (%p394) target = $region40
        $region39: #{tpu_custom_call.1} parent=35 // pred_region
          %s397 = smul.u32 4, %s23
          %s399 = ssub.s32 512, 512
          %400 = vsyncadd %s385, %s399
          %s401 = smul.addr %s397, 128
          %s402 = scalar_lea.hbm %s4, %s401
          %s403 = sshll.u32 %s388, 4
          %s404 = int_to_ptr.vmem [resolvable:$true] %s403
          %409 = dma.vmem_to_hbm [thread:$0]  %s404, 512, %s402, %s385, 128, 128, 8
        $region40: #{tpu_custom_call.1} parent=35 // pred_fallthru
          _
        // Predicated region
        $region41: #{tpu_custom_call.1} parent=35 // pred_check
          %p410 = pneg %p171
        $region42: #{tpu_custom_call.1} parent=35 // pred_check_branch
          %412 = sbr.rel (%p410) target = $region44
        $region43: #{tpu_custom_call.1} parent=35 // pred_region
          %s413 = smul.u32 4, %s23
          %s415 = ssub.s32 512, 512
          %416 = vsyncadd %s390, %s415
          %s417 = smul.addr %s413, 128
          %s418 = scalar_lea.hbm %s5, %s417
          %s419 = sshll.u32 %s393, 4
          %s420 = int_to_ptr.vmem [resolvable:$true] %s419
          %425 = dma.vmem_to_hbm [thread:$0]  %s420, 512, %s418, %s390, 128, 128, 8
        $region44: #{tpu_custom_call.1} parent=35 // pred_fallthru
          _
      $region36: #{tpu_custom_call.1} parent=5 // pred_fallthru
        _
      %p426 = scmp.le.s32.totalorder 2, %s18
      // Predicated region
      $region45: #{tpu_custom_call.1} parent=5 // pred_check
        %p427 = pneg %p426
      $region46: #{tpu_custom_call.1} parent=5 // pred_check_branch
        %429 = sbr.rel (%p427) target = $region48
      $region47: #{tpu_custom_call.1} parent=5 // pred_region
        %s430 = ssub.s32 %s18, 2
        // Predicated region
        $region49: #{tpu_custom_call.1} parent=47 // pred_check
          %p431 = pneg %p151
        $region50: #{tpu_custom_call.1} parent=47 // pred_check_branch
          %433 = sbr.rel (%p431) target = $region52
        $region51: #{tpu_custom_call.1} parent=47 // pred_region
          %s434 = sand.u32 %s136, 1
          %s435 = scalar_lea.sflag [#allocation3], %s434
          %s436 = sand.u32 %s136, 1
          %s437 = smul.addr %s436, 32
          %s438 = scalar_lea.vmem [#allocation2], %s437
          %439 = dma.done %s435, 512
        $region52: #{tpu_custom_call.1} parent=47 // pred_fallthru
          _
        // Predicated region
        $region53: #{tpu_custom_call.1} parent=47 // pred_check
          %p440 = pneg %p177
        $region54: #{tpu_custom_call.1} parent=47 // pred_check_branch
          %442 = sbr.rel (%p440) target = $region56
        $region55: #{tpu_custom_call.1} parent=47 // pred_region
          %s443 = sand.u32 %s162, 1
          %s444 = scalar_lea.sflag [#allocation5], %s443
          %s445 = sand.u32 %s162, 1
          %s446 = smul.addr %s445, 32
          %s447 = scalar_lea.vmem [#allocation4], %s446
          %448 = dma.done %s444, 512
        $region56: #{tpu_custom_call.1} parent=47 // pred_fallthru
          _
      $region48: #{tpu_custom_call.1} parent=5 // pred_fallthru
        _
    $region6: #{tpu_custom_call.1} parent=1 // loop_footer
      %s22 = sadd.s32 1, %s18
    $region7: #{tpu_custom_call.1} parent=1 // loop_footer_branch
      %17 = sbr.rel target = $region3
    $region8: #{tpu_custom_call.1} parent=1 // loop_exit
      _
    %449 = vsyncpa [#allocation3], 1
    %s450 = scalar_lea.sflag [#allocation3], 1
    %451 = vsyncpa %s450, 1
    %452 = vsyncpa [#allocation5], 1
    %s453 = scalar_lea.sflag [#allocation5], 1
    %454 = vsyncpa %s453, 1

</llo_original>
